<compile_context>
chip_gen: v6e
topology: v6e:2x2x1
jax: 0.10.0
libtpu: 0.0.40
codegen_flags: <defaults>
</compile_context>

<pallas_src>
import functools

import jax
import jax.numpy as jnp
from jax.experimental import pallas as pl
from jax.experimental.pallas import tpu as pltpu


def _round_up(a, m):
    return ((a + m - 1) // m) * m


def _vmem_info():
    """(physical VMEM bytes, block budget bytes) for the current chip."""
    try:
        phys = int(pltpu.get_tpu_info().vmem_capacity_bytes)
        if phys <= 0:
            raise ValueError("bad vmem capacity")
    except Exception:
        phys = 64 << 20  # conservative default: v7x has 64 MiB per TensorCore
    budget = max(12 << 20, phys // 2 - (4 << 20))
    return phys, budget


def _block_cost_bytes(tb, ts, D, NP, xbytes):
    """Rough per-grid-step VMEM footprint for the chosen tiling."""
    return (2 * tb * ts * D * xbytes   # double-buffered X block
            + 2 * D * NP * 2           # fused bf16 weight (x2 buffers, safe)
            + 2 * NP * 4               # bias block
            + 2 * tb * NP * 4          # f32 output block
            + tb * ts * NP * 4         # f32 `fused` intermediate
            + tb * NP * 4 + tb * 8     # accumulator / running max / denom
            + tb * ts * 12             # logits / e temporaries
            + (2 << 20))               # headroom for Mosaic internals


def _choose_tiling(B, S, D, NP, budget, xbytes, tb_user, ts_user):
    """Returns (tb, ts, Sp).  ts == S (== Sp) means a single sequence tile."""
    # Batch tile: >=2 grid steps so v7x's two TensorCores get work via the
    # 'parallel' axis, >=4 steps when B is large so the DMA pipeline overlaps;
    # per-step overhead is only ~0.35 us.  Padding tiny batches is a net loss.
    if tb_user is not None:
        tb = max(1, int(tb_user))
    elif B < 16:
        tb = B
    elif B < 64:
        tb = max(8, (-(-B // 2) // 8) * 8)            # ~2 steps
    else:
        tb = max(8, min(256, (-(-B // 4) // 8) * 8))  # >=4 steps

    # Sequence tile: whole S when it fits the VMEM budget, otherwise
    # flash-style S tiling keeps VMEM bounded independent of S.
    if ts_user is not None:
        ts = int(ts_user)
        ts = S if ts >= S else max(8, (ts // 8) * 8)
    elif _block_cost_bytes(tb, S, D, NP, xbytes) <= budget:
        ts = S
    else:
        ts = _round_up(S, 16)
        while ts > 16 and _block_cost_bytes(tb, ts, D, NP, xbytes) > budget:
            ts = max(16, ((ts // 2) // 16) * 16)
        if ts >= S:
            ts = S

    # If even one sequence tile is too big, shrink the batch tile as well.
    while tb > 8 and _block_cost_bytes(tb, ts, D, NP, xbytes) > budget:
        tb = max(8, ((tb // 2) // 8) * 8)

    Sp = S if ts == S else _round_up(S, ts)
    return tb, ts, Sp


def _dnn_pool_kernel(x_ref, w_ref, b_ref, out_ref, m_sc, l_sc, acc_sc, *,
                     att_col, ts, s_valid):
    """Fused linear + flash-style attention pooling.

    x_ref:   (TB, TS, D) bf16 input tile
    w_ref:   (D, NP)     bf16 fused weight  [W1 | wa | 0-pad], NP % 128 == 0
    b_ref:   (1, NP)     f32 padded classifier bias (zeros past column O)
    out_ref: (TB, NP)    f32 lane-dense padded output slab
    m_sc/l_sc: (TB, 1)   f32 running softmax max / denominator
    acc_sc:  (TB, NP)    f32 running (un-normalized) pooled accumulator
    """
    si = pl.program_id(1)

    @pl.when(si == 0)
    def _init():
        m_sc[...] = jnp.full_like(m_sc, -jnp.inf)
        l_sc[...] = jnp.zeros_like(l_sc)
        acc_sc[...] = jnp.zeros_like(acc_sc)

    TB, TS, D = x_ref.shape
    NP = w_ref.shape[1]

    # One MXU pass (bf16 operands, f32 accumulation) produces both the
    # classifier activations (cols [0:O]) and the attention logits (col O).
    x2d = x_ref[...].reshape(TB * TS, D)
    fused = jnp.dot(x2d, w_ref[...], preferred_element_type=jnp.float32)
    fused = fused.reshape(TB, TS, NP)

    logits = fused[:, :, att_col:att_col + 1]              # (TB, TS, 1)
    if s_valid is not None:
        # Zero-padded sequence rows must receive zero attention weight.
        row = si * ts + jax.lax.broadcasted_iota(jnp.int32, (TB, TS, 1), 1)
        logits = jnp.where(row < s_valid, logits, -jnp.inf)

    # Online softmax over the sequence (sublane) axis.  `ba` is omitted
    # (softmax shift invariance); b1 is added once post-pool (weights sum to 1).
    m_old = m_sc[...]                                      # (TB, 1)
    m_new = jnp.maximum(m_old, jnp.max(logits, axis=1))    # (TB, 1)
    alpha = jnp.exp(m_old - m_new)                         # (TB, 1)
    e = jnp.exp(logits - m_new.reshape(TB, 1, 1))          # (TB, TS, 1)
    l_sc[...] = alpha * l_sc[...] + jnp.sum(e, axis=1)     # (TB, 1)
    acc_sc[...] = alpha * acc_sc[...] + jnp.sum(e * fused, axis=1)  # (TB, NP)
    m_sc[...] = m_new

    @pl.when(si == pl.num_programs(1) - 1)
    def _finalize():
        inv = pl.reciprocal(l_sc[...], approx=True)        # EUP slot, ~free
        out_ref[...] = acc_sc[...] * inv + b_ref[...]

    # TODO(synk): if the bundle ever shows VPU/EUP binding for very large S,
    # transpose the logits to a lane-dense (TB, TS) layout for max/exp/sum.


def dnn_pool_classifier_forward(x, w1, b1, wa, ba, *, tb=None, ts=None):
    """Forward of DNNPoolClassifier (num_layers=1, 'linear', pool='attention').

    x: (B, S, D) f32; w1: (D, O); b1: (O,); wa: (D, 1); ba: (1,) -> (B, O) f32.
    `ba` is accepted for API parity with the PyTorch module but softmax is
    shift-invariant, so it is a mathematical no-op and never reaches the kernel.
    """
    del ba  # softmax(x + c) == softmax(x)
    B, S, D = x.shape
    O = w1.shape[1]

    # Fused, lane-padded weight: columns [0:O] = W1, column O = wa, rest zero.
    NP = _round_up(O + 1, 128)
    att_col = O
    w_cat = jnp.zeros((D, NP), jnp.float32)
    w_cat = w_cat.at[:, :O].set(w1.astype(jnp.float32))
    w_cat = w_cat.at[:, O:O + 1].set(wa.astype(jnp.float32))
    b_pad = jnp.zeros((1, NP), jnp.float32).at[:, :O].set(
        b1.reshape(1, O).astype(jnp.float32))

    # bf16 MXU operands; f32 accumulation and f32 softmax math stay in-kernel.
    w_cat = w_cat.astype(jnp.bfloat16)
    x = x.astype(jnp.bfloat16)

    # VMEM-aware, generation-aware tiling (v7x has only 64 MiB per TC).
    phys, budget = _vmem_info()
    xbytes = x.dtype.itemsize
    tb, ts, Sp = _choose_tiling(B, S, D, NP, budget, xbytes, tb, ts)
    need = _block_cost_bytes(tb, ts, D, NP, xbytes)
    vmem_limit = int(min(phys * 3 // 4, max(need + (8 << 20), 32 << 20)))

    # Pad batch / sequence to tile multiples.  Padded sequence rows are masked
    # to -inf logits in-kernel; padded batch rows are sliced off below.
    Bp = _round_up(B, tb)
    if Bp != B or Sp != S:
        x = jnp.pad(x, ((0, Bp - B), (0, Sp - S), (0, 0)))
    s_valid = S if Sp != S else None

    grid = (Bp // tb, Sp // ts)
    kernel = functools.partial(_dnn_pool_kernel, att_col=att_col, ts=ts,
                               s_valid=s_valid)
    out = pl.pallas_call(
        kernel,
        out_shape=jax.ShapeDtypeStruct((Bp, NP), jnp.float32),
        grid=grid,
        in_specs=[
            pl.BlockSpec((tb, ts, D), lambda i, s: (i, s, 0)),  # X tile
            pl.BlockSpec((D, NP), lambda i, s: (0, 0)),         # fused weight
            pl.BlockSpec((1, NP), lambda i, s: (0, 0)),         # padded bias
        ],
        out_specs=pl.BlockSpec((tb, NP), lambda i, s: (i, 0)),  # lane-dense
        scratch_shapes=[
            pltpu.VMEM((tb, 1), jnp.float32),    # running max
            pltpu.VMEM((tb, 1), jnp.float32),    # running denominator
            pltpu.VMEM((tb, NP), jnp.float32),   # running pooled accumulator
        ],
        compiler_params=pltpu.CompilerParams(
            dimension_semantics=("parallel", "arbitrary"),
            vmem_limit_bytes=vmem_limit,
        ),
    )(x, w_cat, b_pad)
    return out[:B, :O]


# TODO(synk): other pool_modes ('last'/'sum'/'mean'/'max'/'pass'), num_layers>1
# with non-linear activations, dropout, and the training/predict loops are not
# exercised by the default config and are not implemented in this kernel.


if __name__ == "__main__":
    def reference(x, w1, b1, wa, ba):
        enc = jnp.einsum("bsd,do->bso", x, w1) + b1.reshape(1, 1, -1)
        att = jax.nn.softmax(
            jnp.einsum("bsd,dk->bsk", x, wa) + ba.reshape(1, 1, 1), axis=1)
        return jnp.sum(att * enc, axis=1)

    # Test 1: module-consistent small shapes (batch=2, seq=8, input=32, out=9);
    # single grid step, whole-S block.
    B, S, D, O = 2, 8, 32, 9
    k = jax.random.split(jax.random.PRNGKey(0), 5)
    x = jax.random.normal(k[0], (B, S, D), dtype=jnp.float32)
    w1 = jax.random.normal(k[1], (D, O), dtype=jnp.float32) * 0.1
    b1 = jax.random.normal(k[2], (O,), dtype=jnp.float32) * 0.1
    wa = jax.random.normal(k[3], (D, 1), dtype=jnp.float32) * 0.1
    ba = jax.random.normal(k[4], (1,), dtype=jnp.float32) * 0.1

    out = jax.block_until_ready(dnn_pool_classifier_forward(x, w1, b1, wa, ba))
    ref = reference(x, w1, b1, wa, ba)
    assert out.shape == (B, O)
    # Tolerance covers bf16 MXU operands + approx-reciprocal normalization.
    assert jnp.allclose(out, ref, atol=2e-2, rtol=2e-2), (out, ref)

    # Test 2: exercises the multi-step batch grid ('parallel' axis) and the
    # flash-style S tiling (forced via ts) with the same semantics.
    B2, S2, D2, O2 = 24, 48, 96, 9
    k = jax.random.split(jax.random.PRNGKey(1), 5)
    x2 = jax.random.normal(k[0], (B2, S2, D2), dtype=jnp.float32)
    w12 = jax.random.normal(k[1], (D2, O2), dtype=jnp.float32) * 0.1
    b12 = jax.random.normal(k[2], (O2,), dtype=jnp.float32) * 0.1
    wa2 = jax.random.normal(k[3], (D2, 1), dtype=jnp.float32) * 0.1
    ba2 = jax.random.normal(k[4], (1,), dtype=jnp.float32) * 0.1

    out2 = jax.block_until_ready(
        dnn_pool_classifier_forward(x2, w12, b12, wa2, ba2, tb=8, ts=16))
    ref2 = reference(x2, w12, b12, wa2, ba2)
    assert out2.shape == (B2, O2)
    assert jnp.allclose(out2, ref2, atol=3e-2, rtol=3e-2), (out2, ref2)

    print("KERNEL_OK")
</pallas_src>

<mosaic_0001>
module attributes {stable_mosaic.version = 11 : i64} {
  func.func @_dnn_pool_kernel(%arg0: i32, %arg1: i32, %arg2: memref<2x8x32xbf16, #tpu.memory_space<vmem>>, %arg3: memref<32x128xbf16, #tpu.memory_space<vmem>>, %arg4: memref<1x128xf32, #tpu.memory_space<vmem>>, %arg5: memref<2x128xf32, #tpu.memory_space<vmem>>, %arg6: memref<2x1xf32, #tpu.memory_space<vmem>>, %arg7: memref<2x1xf32, #tpu.memory_space<vmem>>, %arg8: memref<2x128xf32, #tpu.memory_space<vmem>>) attributes {dimension_semantics = [#tpu.dimension_semantics<parallel>, #tpu.dimension_semantics<arbitrary>], iteration_bounds = array<i64: 1, 1>, scalar_prefetch = 0 : i64, scratch_operands = 3 : i64, tpu.core_type = #tpu.core_type<tc>, window_params = [{transform_indices = @transform_0, window_bounds = array<i64: 2, 8, 32>}, {pipeline_mode = #tpu.pipeline_mode<synchronous>, transform_indices = @transform_1, window_bounds = array<i64: 32, 128>}, {pipeline_mode = #tpu.pipeline_mode<synchronous>, transform_indices = @transform_2, window_bounds = array<i64: 1, 128>}, {transform_indices = @transform_3, window_bounds = array<i64: 2, 128>}]} {
    %c0_i32 = arith.constant 0 : i32
    %0 = arith.cmpi eq, %arg1, %c0_i32 : i32
    %1 = arith.extui %0 : i1 to i32
    %c0_i32_0 = arith.constant 0 : i32
    %2 = arith.cmpi ne, %1, %c0_i32_0 : i32
    scf.if %2 {
      %cst_22 = arith.constant 0xFF800000 : f32
      %35 = vector.broadcast %cst_22 : f32 to vector<2x1xf32>
      %c0_23 = arith.constant 0 : index
      %c0_24 = arith.constant 0 : index
      %36 = vector.load %arg6[%c0_23, %c0_24] : memref<2x1xf32, #tpu.memory_space<vmem>>, vector<2x1xf32>
      tpu.vector_store %arg6[%c0_23, %c0_24], %35 {strides = array<i32>} : memref<2x1xf32, #tpu.memory_space<vmem>>, vector<2x1xf32>,
      %cst_25 = arith.constant 0.000000e+00 : f32
      %37 = vector.broadcast %cst_25 : f32 to vector<2x1xf32>
      %c0_26 = arith.constant 0 : index
      %c0_27 = arith.constant 0 : index
      %38 = vector.load %arg7[%c0_26, %c0_27] : memref<2x1xf32, #tpu.memory_space<vmem>>, vector<2x1xf32>
      tpu.vector_store %arg7[%c0_26, %c0_27], %37 {strides = array<i32>} : memref<2x1xf32, #tpu.memory_space<vmem>>, vector<2x1xf32>,
      %cst_28 = arith.constant 0.000000e+00 : f32
      %39 = vector.broadcast %cst_28 : f32 to vector<2x128xf32>
      %c0_29 = arith.constant 0 : index
      %c0_30 = arith.constant 0 : index
      %40 = vector.load %arg8[%c0_29, %c0_30] : memref<2x128xf32, #tpu.memory_space<vmem>>, vector<2x128xf32>
      tpu.vector_store %arg8[%c0_29, %c0_30], %39 {strides = array<i32>} : memref<2x128xf32, #tpu.memory_space<vmem>>, vector<2x128xf32>,
    } else {
    }
    %c0 = arith.constant 0 : index
    %c0_1 = arith.constant 0 : index
    %c0_2 = arith.constant 0 : index
    %3 = vector.load %arg2[%c0, %c0_1, %c0_2] : memref<2x8x32xbf16, #tpu.memory_space<vmem>>, vector<2x8x32xbf16>
    %4 = vector.shape_cast %3 : vector<2x8x32xbf16> to vector<16x32xbf16>
    %c0_3 = arith.constant 0 : index
    %c0_4 = arith.constant 0 : index
    %5 = vector.load %arg3[%c0_3, %c0_4] : memref<32x128xbf16, #tpu.memory_space<vmem>>, vector<32x128xbf16>
    %cst = arith.constant dense<0.000000e+00> : vector<16x128xf32>
    %6 = tpu.matmul %4, %5, %cst {dimension_numbers = #tpu.dot_dimension_numbers<[1], [0], [0], [1], [0, 0, 1, 1], [], []>} : vector<16x32xbf16>, vector<32x128xbf16>, vector<16x128xf32> -> vector<16x128xf32>
    %7 = vector.shape_cast %6 : vector<16x128xf32> to vector<2x8x128xf32>
    %8 = vector.extract_strided_slice %7 {offsets = [0, 0, 9], sizes = [2, 8, 1], strides = [1, 1, 1]} : vector<2x8x128xf32> to vector<2x8x1xf32>
    %c0_5 = arith.constant 0 : index
    %c0_6 = arith.constant 0 : index
    %9 = vector.load %arg6[%c0_5, %c0_6] : memref<2x1xf32, #tpu.memory_space<vmem>>, vector<2x1xf32>
    %cst_7 = arith.constant dense<0xFF800000> : vector<2x1xf32>
    %10 = vector.multi_reduction <maximumf>, %8, %cst_7 [1] : vector<2x8x1xf32> to vector<2x1xf32>
    %11 = arith.maximumf %9, %10 : vector<2x1xf32>
    %12 = arith.subf %9, %11 : vector<2x1xf32>
    %13 = math.exp %12 : vector<2x1xf32>
    %14 = vector.shape_cast %11 : vector<2x1xf32> to vector<2x1x1xf32>
    %15 = vector.broadcast %14 : vector<2x1x1xf32> to vector<2x8x1xf32>
    %16 = arith.subf %8, %15 : vector<2x8x1xf32>
    %17 = math.exp %16 : vector<2x8x1xf32>
    %c0_8 = arith.constant 0 : index
    %c0_9 = arith.constant 0 : index
    %18 = vector.load %arg7[%c0_8, %c0_9] : memref<2x1xf32, #tpu.memory_space<vmem>>, vector<2x1xf32>
    %19 = arith.mulf %13, %18 : vector<2x1xf32>
    %cst_10 = arith.constant dense<0.000000e+00> : vector<2x1xf32>
    %20 = vector.multi_reduction <add>, %17, %cst_10 [1] : vector<2x8x1xf32> to vector<2x1xf32>
    %21 = arith.addf %19, %20 : vector<2x1xf32>
    %c0_11 = arith.constant 0 : index
    %c0_12 = arith.constant 0 : index
    %22 = vector.load %arg7[%c0_11, %c0_12] : memref<2x1xf32, #tpu.memory_space<vmem>>, vector<2x1xf32>
    tpu.vector_store %arg7[%c0_11, %c0_12], %21 {strides = array<i32>} : memref<2x1xf32, #tpu.memory_space<vmem>>, vector<2x1xf32>,
    %c0_13 = arith.constant 0 : index
    %c0_14 = arith.constant 0 : index
    %23 = vector.load %arg8[%c0_13, %c0_14] : memref<2x128xf32, #tpu.memory_space<vmem>>, vector<2x128xf32>
    %24 = vector.broadcast %13 : vector<2x1xf32> to vector<2x128xf32>
    %25 = arith.mulf %24, %23 : vector<2x128xf32>
    %26 = vector.broadcast %17 : vector<2x8x1xf32> to vector<2x8x128xf32>
    %27 = arith.mulf %26, %7 : vector<2x8x128xf32>
    %cst_15 = arith.constant dense<0.000000e+00> : vector<2x128xf32>
    %28 = vector.multi_reduction <add>, %27, %cst_15 [1] : vector<2x8x128xf32> to vector<2x128xf32>
    %29 = arith.addf %25, %28 : vector<2x128xf32>
    %c0_16 = arith.constant 0 : index
    %c0_17 = arith.constant 0 : index
    %30 = vector.load %arg8[%c0_16, %c0_17] : memref<2x128xf32, #tpu.memory_space<vmem>>, vector<2x128xf32>
    tpu.vector_store %arg8[%c0_16, %c0_17], %29 {strides = array<i32>} : memref<2x128xf32, #tpu.memory_space<vmem>>, vector<2x128xf32>,
    %c0_18 = arith.constant 0 : index
    %c0_19 = arith.constant 0 : index
    %31 = vector.load %arg6[%c0_18, %c0_19] : memref<2x1xf32, #tpu.memory_space<vmem>>, vector<2x1xf32>
    tpu.vector_store %arg6[%c0_18, %c0_19], %11 {strides = array<i32>} : memref<2x1xf32, #tpu.memory_space<vmem>>, vector<2x1xf32>,
    %c0_i32_20 = arith.constant 0 : i32
    %32 = arith.cmpi eq, %arg1, %c0_i32_20 : i32
    %33 = arith.extui %32 : i1 to i32
    %c0_i32_21 = arith.constant 0 : i32
    %34 = arith.cmpi ne, %33, %c0_i32_21 : i32
    scf.if %34 {
      %c0_22 = arith.constant 0 : index
      %c0_23 = arith.constant 0 : index
      %35 = vector.load %arg7[%c0_22, %c0_23] : memref<2x1xf32, #tpu.memory_space<vmem>>, vector<2x1xf32>
      %36 = tpu.reciprocal %35 {approx = true} : vector<2x1xf32> -> vector<2x1xf32>
      %c0_24 = arith.constant 0 : index
      %c0_25 = arith.constant 0 : index
      %37 = vector.load %arg8[%c0_24, %c0_25] : memref<2x128xf32, #tpu.memory_space<vmem>>, vector<2x128xf32>
      %38 = vector.broadcast %36 : vector<2x1xf32> to vector<2x128xf32>
      %39 = arith.mulf %37, %38 : vector<2x128xf32>
      %c0_26 = arith.constant 0 : index
      %c0_27 = arith.constant 0 : index
      %40 = vector.load %arg4[%c0_26, %c0_27] : memref<1x128xf32, #tpu.memory_space<vmem>>, vector<1x128xf32>
      %41 = vector.broadcast %40 : vector<1x128xf32> to vector<2x128xf32>
      %42 = arith.addf %39, %41 : vector<2x128xf32>
      %c0_28 = arith.constant 0 : index
      %c0_29 = arith.constant 0 : index
      %43 = vector.load %arg5[%c0_28, %c0_29] : memref<2x128xf32, #tpu.memory_space<vmem>>, vector<2x128xf32>
      tpu.vector_store %arg5[%c0_28, %c0_29], %42 {strides = array<i32>} : memref<2x128xf32, #tpu.memory_space<vmem>>, vector<2x128xf32>,
    } else {
    }
    return
  }
  func.func @transform_0(%arg0: i32, %arg1: i32) -> (i32, i32, i32) {
    %c0_i32 = arith.constant 0 : i32
    %c0_i32_0 = arith.constant 0 : i32
    return %arg0, %arg1, %c0_i32 : i32, i32, i32
  }
  func.func @transform_1(%arg0: i32, %arg1: i32) -> (i32, i32) {
    %c0_i32 = arith.constant 0 : i32
    %c0_i32_0 = arith.constant 0 : i32
    %c0_i32_1 = arith.constant 0 : i32
    return %c0_i32, %c0_i32_0 : i32, i32
  }
  func.func @transform_2(%arg0: i32, %arg1: i32) -> (i32, i32) {
    %c0_i32 = arith.constant 0 : i32
    %c0_i32_0 = arith.constant 0 : i32
    %c0_i32_1 = arith.constant 0 : i32
    return %c0_i32, %c0_i32_0 : i32, i32
  }
  func.func @transform_3(%arg0: i32, %arg1: i32) -> (i32, i32) {
    %c0_i32 = arith.constant 0 : i32
    %c0_i32_0 = arith.constant 0 : i32
    return %arg0, %c0_i32 : i32, i32
  }
}

</mosaic_0001>

<llo_original>
// kernel: tpu_custom_call.1
$region0: #{tpu_custom_call.1}
  #allocation0 [shape = 'u32[]', space=smem, size = 0x4, offset = 0x4, fixed_abs, tag = 'smem constant byte address 0x4 - core index']
  #allocation1 [shape = 'u32[144,128]{1,0:T(1,128)}', space=vmem, size = 0x12000, scoped, tag = 'internal scratch']
  #allocation2 [shape = 'f32[2,1]{1,0:T(2,128)}', space=vmem, size = 0x400, scoped, tag = 'scratch operand']
  #allocation3 [shape = 'f32[2,1]{1,0:T(2,128)}', space=vmem, size = 0x400, scoped, tag = 'scratch operand']
  #allocation4 [shape = 'f32[2,128]{1,0:T(2,128)}', space=vmem, size = 0x400, scoped, tag = 'scratch operand']
  %s0 = inlined_call_operand.hbm [shape: bf16[2,8,32], index: 0, kind: input, shape index: {}]
  %s1 = inlined_call_operand.hbm [shape: bf16[32,128], index: 1, kind: input, shape index: {}]
  %s2 = inlined_call_operand.vmem [shape: f32[1,128], index: 2, kind: input, shape index: {}]
  %s3 = inlined_call_operand.hbm [shape: f32[2,128], index: 3, kind: output, shape index: {}]
  %s4 = sld [smem:[#allocation0]]
  $region38: #{tpu_custom_call.1} parent=0
    _
  %s6 = ssub.s32 1, %s4
  %s7 = scalar_select 0, %s6, %s4
  $region1: #{tpu_custom_call.1} parent=0
    #allocation5 [shape = 'u8[4096]{0}', space=vmem, size = 0x1000, scoped, tag = 'input window, operand 0, single buffered']
    #allocation6 [shape = 's32[1]{0}', space=sflag, size = 0x4, scoped, tag = 'scoped memory for tpu_custom_call.1']
    #allocation7 [shape = 's32[1]{0}', space=sflag, size = 0x4, scoped, tag = 'scoped memory for tpu_custom_call.1']
    #allocation8 [shape = 'u8[8192]{0}', space=vmem, size = 0x2000, scoped, tag = 'input window, operand 1, single buffered']
    #allocation9 [shape = 's32[1]{0}', space=sflag, size = 0x4, scoped, tag = 'scoped memory for tpu_custom_call.1']
    #allocation10 [shape = 'u8[1024]{0}', space=vmem, size = 0x400, scoped, tag = 'output window, operand 0, single buffered']
    %8 = vsyncpa [#allocation6], 0
    %9 = vsyncpa [#allocation9], 0
    %10 = vsyncpa [#allocation7], 0
    // Predicated region
    $region2: #{tpu_custom_call.1} parent=1 // pred_check
      _
    $region3: #{tpu_custom_call.1} parent=1 // pred_check_branch
      %12 = sbr.rel (0) target = $region5
    $region4: #{tpu_custom_call.1} parent=1 // pred_region
      %s14 = ssub.s32 128, 128
      %15 = vsyncadd [#allocation6], %s14
      %s16 = sshll.u32 [#allocation5], 4
      %s17 = int_to_ptr.vmem [resolvable:$true] %s16
      %22 = dma.hbm_to_vmem [thread:$0]  %s0, 128, %s17, [#allocation6], 64, 64, 4
    $region5: #{tpu_custom_call.1} parent=1 // pred_fallthru
      _
    // Predicated region
    $region6: #{tpu_custom_call.1} parent=1 // pred_check
      _
    $region7: #{tpu_custom_call.1} parent=1 // pred_check_branch
      %24 = sbr.rel (0) target = $region9
    $region8: #{tpu_custom_call.1} parent=1 // pred_region
      %s26 = ssub.s32 256, 256
      %27 = vsyncadd [#allocation9], %s26
      %s28 = sshll.u32 [#allocation8], 4
      %s29 = int_to_ptr.vmem [resolvable:$true] %s28
      %34 = dma.hbm_to_vmem [thread:$0]  %s1, 256, %s29, [#allocation9], 64, 64, 4
    $region9: #{tpu_custom_call.1} parent=1 // pred_fallthru
      _
    // Predicated region
    $region10: #{tpu_custom_call.1} parent=1 // pred_check
      _
    $region11: #{tpu_custom_call.1} parent=1 // pred_check_branch
      %36 = sbr.rel (0) target = $region13
    $region12: #{tpu_custom_call.1} parent=1 // pred_region
      _
    $region13: #{tpu_custom_call.1} parent=1 // pred_fallthru
      _
    // Predicated region
    $region14: #{tpu_custom_call.1} parent=1 // pred_check
      _
    $region15: #{tpu_custom_call.1} parent=1 // pred_check_branch
      %38 = sbr.rel (0) target = $region17
    $region16: #{tpu_custom_call.1} parent=1 // pred_region
      %39 = dma.done [#allocation6], 128
    $region17: #{tpu_custom_call.1} parent=1 // pred_fallthru
      _
    // Predicated region
    $region18: #{tpu_custom_call.1} parent=1 // pred_check
      _
    $region19: #{tpu_custom_call.1} parent=1 // pred_check_branch
      %41 = sbr.rel (0) target = $region21
    $region20: #{tpu_custom_call.1} parent=1 // pred_region
      %42 = dma.done [#allocation9], 256
    $region21: #{tpu_custom_call.1} parent=1 // pred_fallthru
      _
    %p44 = scmp.eq.s32.totalorder 0, 0
    // Predicated region
    $region22: #{tpu_custom_call.1} parent=1 // pred_check
      %p45 = pneg %p44
    $region23: #{tpu_custom_call.1} parent=1 // pred_check_branch
      %47 = sbr.rel (%p45) target = $region25
    $region24: #{tpu_custom_call.1} parent=1 // pred_region
      %vm48 = vcmask 1024
      %49 = vst.msk [vmem:[#allocation2] sm:$0x3] %vm48, -inf
      %50 = vst.msk [vmem:[#allocation3] sm:$0x3] %vm48, 0.0
      %51 = vst [vmem:[#allocation4] sm:$0x3] 0.0
    $region25: #{tpu_custom_call.1} parent=1 // pred_fallthru
      _
    %v52 = vld [vmem:[#allocation5] sm:$0xf]
    %v53 = vld [vmem:[#allocation5 + $0x4] sm:$0xf]
    %v54 = vld [vmem:[#allocation8] sm:$0xf]
    %v55 = vld [vmem:[#allocation8 + $0x4] sm:$0xf]
    %v56 = vld [vmem:[#allocation8 + $0x8] sm:$0xf]
    %v57 = vld [vmem:[#allocation8 + $0xc] sm:$0xf]
    %v60 = vunpack.c.l.b16 %v52
    %v61 = vunpack.c.l.b16 %v53
    %v62 = vpack.c.b16 %v61, %v60
    %v67 = vunpack.c.l.b16 %v54
    %v68 = vunpack.c.l.b16 %v55
    %v69 = vunpack.c.l.b16 %v56
    %v70 = vunpack.c.l.b16 %v57
    %v71 = vpack.c.b16 %v68, %v67
    %v72 = vpack.c.b16 %v70, %v69
    %vm75 = vcmask 261120
    %v77 = vsel %vm75, %v62, 0
    %79 = vmatprep.subr.bf16.mxu0 0
    %80 = vmatpush1.bf16.msra.mxu0 0
    %81 = vmatprep.subr.bf16.mxu0 0
    %82 = vmatpush1.bf16.msra.mxu0 0
    %83 = vmatprep.subr.bf16.mxu0 0
    %84 = vmatpush1.bf16.msra.mxu0 0
    %85 = vmatprep.subr.bf16.mxu0 0
    %86 = vmatpush1.bf16.msra.mxu0 0
    %87 = vmatprep.subr.bf16.mxu0 0
    %88 = vmatpush1.bf16.msra.mxu0 0
    %89 = vmatprep.subr.bf16.mxu0 0
    %90 = vmatpush1.bf16.msra.mxu0 0
    %91 = vmatprep.subr.bf16.mxu0 0
    %92 = vmatpush1.bf16.msra.mxu0 %v72
    %93 = vmatprep.subr.bf16.mxu0 0
    %94 = vmatpush1.bf16.msra.mxu0 %v71
    %95 = vmatprep.subr.bf16.mxu0 0
    %96 = vmatpush2.bf16.msra.mxu0 0
    %97 = vmatprep.subr.bf16.mxu0 0
    %98 = vmatpush2.bf16.msra.mxu0 0
    %99 = vmatprep.subr.bf16.mxu0 0
    %100 = vmatpush2.bf16.msra.mxu0 0
    %101 = vmatprep.subr.bf16.mxu0 0
    %102 = vmatpush2.bf16.msra.mxu0 0
    %103 = vmatprep.subr.bf16.mxu0 0
    %104 = vmatpush2.bf16.msra.mxu0 0
    %105 = vmatprep.subr.bf16.mxu0 0
    %106 = vmatpush2.bf16.msra.mxu0 0
    %107 = vmatprep.subr.bf16.mxu0 0
    %108 = vmatpush2.bf16.msra.mxu0 0
    %109 = vmatprep.subr.bf16.mxu0 0
    %110 = vmatpush2.bf16.msra.mxu0 0
    %111 = vmatprep.mubr.bf16.mxu0 0
    %112 = vmatmul.mubr.bf16.gmra.mxu0 %v77
    %v113 = vpop.f32.mrf.mxu0
    %v114 = vadd.f32 0.0, %v113
    %v115 = vpop.f32.mrf.mxu0
    %v116 = vpop.f32.mrf.mxu0
    %v117 = vadd.f32 0.0, %v116
    %v118 = vpop.f32.mrf.mxu0
    %119 = vdwg.mxu0
    %v120 = vld [vmem:[#allocation2] sm:$0x3]
    %vm121 = vcmask 80968
    %v122 = vsel %vm121, %v114, -inf
    %v123 = vrot.slane %v122, 4
    %v124 = vmax.f32 %v122, %v123
    %v125 = vrot.slane %v124, 2
    %v126 = vmax.f32 %v124, %v125
    %v127 = vrot.slane %v126, 1
    %v128 = vmax.f32 %v126, %v127
    %v129 = vsel %vm121, %v117, -inf
    %v130 = vrot.slane %v129, 4
    %v131 = vmax.f32 %v129, %v130
    %v132 = vrot.slane %v131, 2
    %v133 = vmax.f32 %v131, %v132
    %v134 = vrot.slane %v133, 1
    %v135 = vmax.f32 %v133, %v134
    %vm138 = vcmask 1041409
    %v139 = vsel %vm138, %v135, %v128
    %140 = vrot.lane.b32.xlu0 %v139, 119
    %v141 = vpop.permute.xlu0 %140
    %v143 = vmax.f32 %v120, %v141
    %v144 = vsub.f32 %v120, %v143
    %v145 = vmul.f32 %v144, 1.442695
    %v146 = vpow.pop %v145
    %v149 = vunpack.c.l.s4 1966171168
    %v150 = vunpack.c.0.s8 %v149
    %v151 = vlaneseq
    %v152 = vshrl.u32 %v151, 7
    %v153 = vsub.s32 %v150, %v152
    %v154 = vrot.slane %v143, %v153
    %v155 = vcombine.high %v154, %v154
    %v157 = vunpack.c.l.s4 1966171168
    %v158 = vunpack.c.0.s8 %v157
    %v159 = vlaneseq
    %v160 = vshrl.u32 %v159, 7
    %v161 = vsub.s32 %v158, %v160
    %v162 = vrot.slane %v154, %v161
    %v164 = vunpack.c.l.s4 1966171168
    %v165 = vunpack.c.0.s8 %v164
    %v166 = vlaneseq
    %v167 = vshrl.u32 %v166, 7
    %v168 = vsub.s32 %v165, %v167
    %v169 = vrot.slane %v155, %v168
    %v170 = vlaneseq
    %v171 = vshrl.u32 %v170, 7
    %v172 = vsub.s32 0, %v171
    %v173 = vrot.slane %v162, %v172
    %v174 = vlaneseq
    %v175 = vshrl.u32 %v174, 7
    %v176 = vsub.s32 0, %v175
    %v177 = vrot.slane %v169, %v176
    %178 = vrot.lane.b32.xlu0 %v173, 9
    %v179 = vpop.permute.xlu0 %178
    %180 = vrot.lane.b32.xlu0 %v177, 9
    %v181 = vpop.permute.xlu0 %180
    %v184 = vsub.f32 %v114, %v179
    %v185 = vsub.f32 %v117, %v181
    %v186 = vmul.f32 %v184, 1.442695
    %v187 = vpow.pop %v186
    %v188 = vmul.f32 %v185, 1.442695
    %v189 = vpow.pop %v188
    %v190 = vld [vmem:[#allocation3] sm:$0x3]
    %v191 = vmul.f32 %v146, %v190
    %v192 = vsel %vm121, %v187, 0.0
    %v193 = vrot.slane %v192, 4
    %v194 = vadd.f32 %v192, %v193
    %v195 = vrot.slane %v194, 2
    %v196 = vadd.f32 %v194, %v195
    %v197 = vrot.slane %v196, 1
    %v198 = vadd.f32 %v196, %v197
    %v199 = vsel %vm121, %v189, 0.0
    %v200 = vrot.slane %v199, 4
    %v201 = vadd.f32 %v199, %v200
    %v202 = vrot.slane %v201, 2
    %v203 = vadd.f32 %v201, %v202
    %v204 = vrot.slane %v203, 1
    %v205 = vadd.f32 %v203, %v204
    %v208 = vsel %vm138, %v205, %v198
    %209 = vrot.lane.b32.xlu0 %v208, 119
    %v210 = vpop.permute.xlu0 %209
    %v212 = vadd.f32 %v191, %v210
    %vm213 = vcmask 1024
    %214 = vst.msk [vmem:[#allocation3] sm:$0x3] %vm213, %v212
    %v215 = vld [vmem:[#allocation4] sm:$0x3]
    %217 = vset.pattern.permute.xlu0 0
    %218 = vperm.xlu0 %217, %v146
    %v219 = vpop.permute.xlu0 %218
    %v221 = vmul.f32 %v219, %v215
    %223 = vset.pattern.permute.xlu0 9
    %224 = vperm.xlu0 %223, %v187
    %v225 = vpop.permute.xlu0 %224
    %228 = vset.pattern.permute.xlu0 9
    %229 = vperm.xlu0 %228, %v189
    %v230 = vpop.permute.xlu0 %229
    %v232 = vmul.f32 %v225, %v114
    %v233 = vmul.f32 %v230, %v117
    %v234 = vrot.slane %v232, 4
    %v235 = vadd.f32 %v232, %v234
    %v236 = vrot.slane %v235, 2
    %v237 = vadd.f32 %v235, %v236
    %v238 = vrot.slane %v237, 1
    %v239 = vadd.f32 %v237, %v238
    %v240 = vrot.slane %v233, 4
    %v241 = vadd.f32 %v233, %v240
    %v242 = vrot.slane %v241, 2
    %v243 = vadd.f32 %v241, %v242
    %v244 = vrot.slane %v243, 1
    %v245 = vadd.f32 %v243, %v244
    %v248 = vsel %vm138, %v245, %v239
    %v250 = vadd.f32 %v221, %v248
    %251 = vst [vmem:[#allocation4] sm:$0x3] %v250
    %252 = vst.msk [vmem:[#allocation2] sm:$0x3] %vm213, %v143
    // Predicated region
    $region26: #{tpu_custom_call.1} parent=1 // pred_check
      %p253 = pneg %p44
    $region27: #{tpu_custom_call.1} parent=1 // pred_check_branch
      %255 = sbr.rel (%p253) target = $region29
    $region28: #{tpu_custom_call.1} parent=1 // pred_region
      %v256 = vld [vmem:[#allocation3] sm:$0x3]
      %v257 = vrcp.pop %v256
      %v258 = vld [vmem:[#allocation4] sm:$0x3]
      %260 = vset.pattern.permute.xlu0 0
      %261 = vperm.xlu0 %260, %v257
      %v262 = vpop.permute.xlu0 %261
      %v264 = vmul.f32 %v258, %v262
      %v265 = vld [vmem:[%s2] sm:$0x1]
      %v267 = vlaneseq
      %v268 = vshrl.u32 %v267, 7
      %v269 = vsub.s32 0, %v268
      %v270 = vrot.slane %v265, %v269
      %v272 = vadd.f32 %v264, %v270
      %273 = vst [vmem:[#allocation10] sm:$0x3] %v272
    $region29: #{tpu_custom_call.1} parent=1 // pred_fallthru
      _
    // Predicated region
    $region30: #{tpu_custom_call.1} parent=1 // pred_check
      _
    $region31: #{tpu_custom_call.1} parent=1 // pred_check_branch
      %275 = sbr.rel (0) target = $region33
    $region32: #{tpu_custom_call.1} parent=1 // pred_region
      %s277 = ssub.s32 32, 32
      %278 = vsyncadd [#allocation7], %s277
      %s280 = sshll.u32 [#allocation10], 4
      %s281 = int_to_ptr.vmem [resolvable:$true] %s280
      %283 = dma.vmem_to_hbm [thread:$0]  %s281, 32, %s3, [#allocation7]
    $region33: #{tpu_custom_call.1} parent=1 // pred_fallthru
      _
    // Predicated region
    $region34: #{tpu_custom_call.1} parent=1 // pred_check
      _
    $region35: #{tpu_custom_call.1} parent=1 // pred_check_branch
      %285 = sbr.rel (0) target = $region37
    $region36: #{tpu_custom_call.1} parent=1 // pred_region
      %286 = dma.done [#allocation7], 32
    $region37: #{tpu_custom_call.1} parent=1 // pred_fallthru
      _
    %287 = vsyncpa [#allocation6], 1
    %288 = vsyncpa [#allocation9], 1
    %289 = vsyncpa [#allocation7], 1

</llo_original>
